<compile_context>
chip_gen: v6e
topology: v6e:2x2x1
jax: 0.10.0
libtpu: 0.0.40
codegen_flags: <defaults>
</compile_context>

<pallas_src>
import jax
import jax.numpy as jnp
from jax.experimental import pallas as pl
from jax.experimental.pallas import tpu as pltpu


# ---------------------------------------------------------------------------
# Best-effort hardware queries (safe fallbacks if the API is unavailable).
# ---------------------------------------------------------------------------
def _vmem_limit_bytes():
    try:
        cap = getattr(pltpu.get_tpu_info(), "vmem_capacity_bytes", None)
        if cap:
            # 75% of physical: ~96 MiB on v5e/v6e, ~48 MiB on v7x.
            return int(cap) * 3 // 4
    except Exception:
        pass
    return 48 * 1024 * 1024  # conservative default, safe on v7x's 64 MiB


def _num_tensorcores():
    try:
        info = pltpu.get_tpu_info()
        for name in ("num_cores", "tensorcore_count", "num_tensorcores",
                     "core_count"):
            n = getattr(info, name, None)
            if n:
                return int(n)
    except Exception:
        pass
    return 1


def _choose_tile(dim, max_tile, aligns):
    """Largest divisor of `dim` that is <= max_tile and a multiple of one of
    `aligns` (tried in order); falls back to the full dim (always legal)."""
    if dim <= max_tile:
        return dim
    for align in aligns:
        t = (min(max_tile, dim) // align) * align
        while t >= align:
            if dim % t == 0:
                return t
            t -= align
    return dim


_Q_ALIGNS = (256, 128, 16, 8)   # 256-aligned for v6e/v7x MXU, >=16 for bf16 pack
_P_ALIGNS = (256, 128)          # scores last dim must be a multiple of 128


# ---------------------------------------------------------------------------
# Kernels
# ---------------------------------------------------------------------------
def _online_softmax_kernel(q_ref, p_ref, scores_ref, lse_ref, m_sc, l_sc):
    pj = pl.program_id(1)

    @pl.when(pj == 0)
    def _init():
        m_sc[...] = jnp.full_like(m_sc, -jnp.inf)
        l_sc[...] = jnp.zeros_like(l_sc)

    # bf16 MXU inputs, f32 accumulation; contract over D (no materialized p.T).
    s = jax.lax.dot_general(
        q_ref[...].astype(jnp.bfloat16), p_ref[...],
        dimension_numbers=(((1,), (1,)), ((), ())),
        preferred_element_type=jnp.float32)            # (TQ, TP) f32
    scores_ref[...] = s.astype(scores_ref.dtype)       # bf16 writeback

    # Online softmax statistics over the P axis.
    m_prev = m_sc[...]
    m_new = jnp.maximum(m_prev, jnp.max(s, axis=-1, keepdims=True))
    alpha = jnp.exp(m_prev - m_new)
    l_sc[...] = alpha * l_sc[...] + jnp.sum(
        jnp.exp(s - m_new), axis=-1, keepdims=True)
    m_sc[...] = m_new

    @pl.when(pj == pl.num_programs(1) - 1)
    def _finalize():
        lse_ref[...] = m_sc[...] + jnp.log(l_sc[...])


def _resident_p_kernel(q_ref, p_ref, scores_ref, lse_ref):
    # p_ref holds the entire passage matrix (index_map constant -> DMA'd once).
    s = jax.lax.dot_general(
        q_ref[...].astype(jnp.bfloat16), p_ref[...],
        dimension_numbers=(((1,), (1,)), ((), ())),
        preferred_element_type=jnp.float32)            # (TQ, P) f32
    scores_ref[...] = s.astype(scores_ref.dtype)
    m = jnp.max(s, axis=-1, keepdims=True)
    lse_ref[...] = m + jnp.log(jnp.sum(jnp.exp(s - m), axis=-1, keepdims=True))


# ---------------------------------------------------------------------------
# Wrapper
# ---------------------------------------------------------------------------
def document_encoder_forward(q_reps, p_reps, *, tq=1024, tp=512,
                             scores_dtype=jnp.bfloat16, force_online=False):
    """Pallas implementation of DocumentEncoder.forward (in-batch negatives)."""
    Q, D = q_reps.shape
    P, Dp = p_reps.shape
    assert D == Dp and P % Q == 0
    stride = P // Q

    vmem_limit = _vmem_limit_bytes()
    budget = vmem_limit - (4 << 20)            # headroom for compiler scratch
    n_tc = _num_tensorcores()
    sco_b = jnp.dtype(scores_dtype).itemsize

    # p cast once here (amortized); q stays f32 and is cast inside the kernel.
    p_bf = p_reps.astype(jnp.bfloat16)

    # --- Q tile: big, MXU aligned, but leave >= n_tc blocks for megacore. ----
    tq_cap = tq
    if n_tc > 1 and Q // n_tc >= 16:
        tq_cap = min(tq_cap, Q // n_tc)
    TQ = _choose_tile(Q, tq_cap, _Q_ALIGNS)

    # Conservative double-buffered footprints (bytes).
    def resident_footprint(tq_):
        return 2 * (tq_ * D * 4 + tq_ * P * sco_b + tq_ * 4) + 2 * P * D * 2

    def online_footprint(tq_, tp_):
        return (2 * (tq_ * D * 4 + tp_ * D * 2 + tq_ * tp_ * sco_b + tq_ * 4)
                + 2 * tq_ * 4)

    use_resident = (not force_online) and resident_footprint(16) <= budget

    if use_resident:
        # -------- resident-p fast path: 1-D grid over Q ----------------------
        while resident_footprint(TQ) > budget and TQ > 16:
            new_tq = _choose_tile(Q, max(16, TQ // 2), _Q_ALIGNS)
            if new_tq >= TQ:
                break
            TQ = new_tq

        scores, lse = pl.pallas_call(
            _resident_p_kernel,
            out_shape=(
                jax.ShapeDtypeStruct((Q, P), scores_dtype),
                jax.ShapeDtypeStruct((Q, 1), jnp.float32),
            ),
            grid_spec=pltpu.PrefetchScalarGridSpec(
                num_scalar_prefetch=0,
                grid=(Q // TQ,),
                in_specs=[
                    pl.BlockSpec((TQ, D), lambda i: (i, 0)),
                    pl.BlockSpec((P, D), lambda i: (0, 0)),   # resident in VMEM
                ],
                out_specs=(
                    pl.BlockSpec((TQ, P), lambda i: (i, 0)),
                    pl.BlockSpec((TQ, 1), lambda i: (i, 0)),
                ),
            ),
            compiler_params=pltpu.CompilerParams(
                dimension_semantics=("parallel",),
                vmem_limit_bytes=vmem_limit,
            ),
        )(q_reps, p_bf)
    else:
        # -------- 2-D online-softmax grid ------------------------------------
        TP = _choose_tile(P, tp, _P_ALIGNS)
        while online_footprint(TQ, TP) > budget:
            if TP > 128:
                new_tp = _choose_tile(P, max(128, TP // 2), _P_ALIGNS)
                if new_tp < TP:
                    TP = new_tp
                    continue
            if TQ > 16:
                new_tq = _choose_tile(Q, max(16, TQ // 2), _Q_ALIGNS)
                if new_tq < TQ:
                    TQ = new_tq
                    continue
            break

        # NOTE: if a profile shows exposed DMA on the p stream, add
        # pipeline_mode=pl.Buffered(3) to the p BlockSpec instead of shrinking TP.
        scores, lse = pl.pallas_call(
            _online_softmax_kernel,
            out_shape=(
                jax.ShapeDtypeStruct((Q, P), scores_dtype),
                jax.ShapeDtypeStruct((Q, 1), jnp.float32),
            ),
            grid_spec=pltpu.PrefetchScalarGridSpec(
                num_scalar_prefetch=0,
                grid=(Q // TQ, P // TP),
                in_specs=[
                    pl.BlockSpec((TQ, D), lambda i, j: (i, 0)),
                    pl.BlockSpec((TP, D), lambda i, j: (j, 0)),
                ],
                out_specs=(
                    pl.BlockSpec((TQ, TP), lambda i, j: (i, j)),
                    pl.BlockSpec((TQ, 1), lambda i, j: (i, 0)),
                ),
                scratch_shapes=[
                    pltpu.VMEM((TQ, 1), jnp.float32),   # running max
                    pltpu.VMEM((TQ, 1), jnp.float32),   # running sum-exp
                ],
            ),
            compiler_params=pltpu.CompilerParams(
                dimension_semantics=("parallel", "arbitrary"),
                vmem_limit_bytes=vmem_limit,
            ),
        )(q_reps, p_bf)

    # Target logit in the wrapper: tiny O(Q*D) op with the same bf16-in /
    # f32-accum semantics as the kernel matmul.
    pos_p_reps = p_reps[::stride]                 # == p_reps[arange(Q) * stride]
    q32 = q_reps.astype(jnp.bfloat16).astype(jnp.float32)
    pos32 = pos_p_reps.astype(jnp.bfloat16).astype(jnp.float32)
    tgt_logit = jnp.sum(q32 * pos32, axis=-1)     # (Q,)

    loss = jnp.mean(lse[:, 0] - tgt_logit)        # mean cross-entropy over Q

    return {
        "loss": loss,
        "scores": scores,
        "q_reps": q_reps,
        "p_reps": p_reps,
        "pos_p_reps": pos_p_reps,
    }


# ---------------------------------------------------------------------------
# Plain-JAX reference (same bf16-input / f32-accum matmul semantics).
# ---------------------------------------------------------------------------
def _reference_forward(q_reps, p_reps):
    Q, _ = q_reps.shape
    P, _ = p_reps.shape
    scores = jax.lax.dot_general(
        q_reps.astype(jnp.bfloat16), p_reps.astype(jnp.bfloat16),
        dimension_numbers=(((1,), (1,)), ((), ())),
        preferred_element_type=jnp.float32)
    target = jnp.arange(Q) * (P // Q)
    logprobs = jax.nn.log_softmax(scores, axis=-1)
    loss = -jnp.mean(logprobs[jnp.arange(Q), target])
    return scores, loss


if __name__ == "__main__":
    key = jax.random.PRNGKey(0)
    kq, kp = jax.random.split(key)

    # 16 queries, 256 passages (16 per query), hidden 128 — small but tileable.
    Q, P, D = 16, 256, 128
    q_reps = jax.random.normal(kq, (Q, D), dtype=jnp.float32)
    p_reps = jax.random.normal(kp, (P, D), dtype=jnp.float32)

    ref_scores, ref_loss = _reference_forward(q_reps, p_reps)
    ref_pos = p_reps[jnp.arange(Q) * (P // Q)]

    # Exercise both the resident-p fast path (default) and the 2-D online-
    # softmax path (forced, with small tiles so the P grid has 2 blocks).
    configs = [
        dict(),
        dict(force_online=True, tq=16, tp=128),
    ]
    for kwargs in configs:
        out = document_encoder_forward(q_reps, p_reps, **kwargs)
        jax.block_until_ready(out["loss"])
        jax.block_until_ready(out["scores"])

        scores_f32 = out["scores"].astype(jnp.float32)
        ok = (
            jnp.allclose(scores_f32, ref_scores, rtol=2e-2, atol=2e-1)
            and jnp.allclose(out["loss"], ref_loss, rtol=2e-3, atol=2e-3)
            and jnp.allclose(out["pos_p_reps"], ref_pos)
        )
        if not ok:
            raise AssertionError(
                f"Pallas output mismatch vs reference (config={kwargs})")

    print("KERNEL_OK")
</pallas_src>

<mosaic_0001>
module attributes {stable_mosaic.version = 11 : i64} {
  func.func @_resident_p_kernel(%arg0: i32, %arg1: memref<16x128xf32, #tpu.memory_space<vmem>>, %arg2: memref<256x128xbf16, #tpu.memory_space<vmem>>, %arg3: memref<16x256xbf16, #tpu.memory_space<vmem>>, %arg4: memref<16x1xf32, #tpu.memory_space<vmem>>) attributes {dimension_semantics = [#tpu.dimension_semantics<parallel>], iteration_bounds = array<i64: 1>, scalar_prefetch = 0 : i64, scratch_operands = 0 : i64, tpu.core_type = #tpu.core_type<tc>, window_params = [{transform_indices = @transform_0, window_bounds = array<i64: 16, 128>}, {pipeline_mode = #tpu.pipeline_mode<synchronous>, transform_indices = @transform_1, window_bounds = array<i64: 256, 128>}, {transform_indices = @transform_2, window_bounds = array<i64: 16, 256>}, {transform_indices = @transform_3, window_bounds = array<i64: 16, 1>}]} {
    %c0 = arith.constant 0 : index
    %c0_0 = arith.constant 0 : index
    %0 = vector.load %arg1[%c0, %c0_0] : memref<16x128xf32, #tpu.memory_space<vmem>>, vector<16x128xf32>
    %1 = arith.truncf %0 : vector<16x128xf32> to vector<16x128xbf16>
    %c0_1 = arith.constant 0 : index
    %c0_2 = arith.constant 0 : index
    %2 = vector.load %arg2[%c0_1, %c0_2] : memref<256x128xbf16, #tpu.memory_space<vmem>>, vector<256x128xbf16>
    %cst = arith.constant dense<0.000000e+00> : vector<16x256xf32>
    %3 = tpu.matmul %1, %2, %cst {dimension_numbers = #tpu.dot_dimension_numbers<[1], [1], [0], [0], [0, 0, 1, 0], [], []>} : vector<16x128xbf16>, vector<256x128xbf16>, vector<16x256xf32> -> vector<16x256xf32>
    %4 = arith.truncf %3 : vector<16x256xf32> to vector<16x256xbf16>
    %c0_3 = arith.constant 0 : index
    %c0_4 = arith.constant 0 : index
    %5 = vector.load %arg3[%c0_3, %c0_4] : memref<16x256xbf16, #tpu.memory_space<vmem>>, vector<16x256xbf16>
    tpu.vector_store %arg3[%c0_3, %c0_4], %4 {strides = array<i32>} : memref<16x256xbf16, #tpu.memory_space<vmem>>, vector<16x256xbf16>,
    %cst_5 = arith.constant dense<0xFF800000> : vector<16xf32>
    %6 = vector.multi_reduction <maximumf>, %3, %cst_5 [1] : vector<16x256xf32> to vector<16xf32>
    %7 = vector.shape_cast %6 : vector<16xf32> to vector<16x1xf32>
    %8 = vector.broadcast %7 : vector<16x1xf32> to vector<16x256xf32>
    %9 = arith.subf %3, %8 : vector<16x256xf32>
    %10 = math.exp %9 : vector<16x256xf32>
    %cst_6 = arith.constant dense<0.000000e+00> : vector<16xf32>
    %11 = vector.multi_reduction <add>, %10, %cst_6 [1] : vector<16x256xf32> to vector<16xf32>
    %12 = vector.shape_cast %11 : vector<16xf32> to vector<16x1xf32>
    %13 = math.log %12 : vector<16x1xf32>
    %14 = arith.addf %7, %13 : vector<16x1xf32>
    %c0_7 = arith.constant 0 : index
    %c0_8 = arith.constant 0 : index
    %15 = vector.load %arg4[%c0_7, %c0_8] : memref<16x1xf32, #tpu.memory_space<vmem>>, vector<16x1xf32>
    tpu.vector_store %arg4[%c0_7, %c0_8], %14 {strides = array<i32>} : memref<16x1xf32, #tpu.memory_space<vmem>>, vector<16x1xf32>,
    return
  }
  func.func @transform_0(%arg0: i32) -> (i32, i32) {
    %c0_i32 = arith.constant 0 : i32
    %c0_i32_0 = arith.constant 0 : i32
    return %arg0, %c0_i32 : i32, i32
  }
  func.func @transform_1(%arg0: i32) -> (i32, i32) {
    %c0_i32 = arith.constant 0 : i32
    %c0_i32_0 = arith.constant 0 : i32
    %c0_i32_1 = arith.constant 0 : i32
    return %c0_i32, %c0_i32_0 : i32, i32
  }
  func.func @transform_2(%arg0: i32) -> (i32, i32) {
    %c0_i32 = arith.constant 0 : i32
    %c0_i32_0 = arith.constant 0 : i32
    return %arg0, %c0_i32 : i32, i32
  }
  func.func @transform_3(%arg0: i32) -> (i32, i32) {
    %c0_i32 = arith.constant 0 : i32
    %c0_i32_0 = arith.constant 0 : i32
    return %arg0, %c0_i32 : i32, i32
  }
}

</mosaic_0001>

<llo_original>
// kernel: tpu_custom_call.1
$region0: #{tpu_custom_call.1}
  #allocation0 [shape = 'u32[]', space=smem, size = 0x4, offset = 0x4, fixed_abs, tag = 'smem constant byte address 0x4 - core index']
  #allocation1 [shape = 'u32[144,128]{1,0:T(1,128)}', space=vmem, size = 0x12000, scoped, tag = 'internal scratch']
  %s0 = inlined_call_operand.hbm [shape: f32[16,128], index: 0, kind: input, shape index: {}]
  %s1 = inlined_call_operand.hbm [shape: bf16[256,128], index: 1, kind: input, shape index: {}]
  %s2 = inlined_call_operand.hbm [shape: bf16[16,256], index: 2, kind: output, shape index: {0}]
  %s3 = inlined_call_operand.vmem [shape: f32[16,1], index: 3, kind: output, shape index: {1}]
  %4 = xla_tuple %s2, %s3
  %s5 = sld [smem:[#allocation0]]
  $region34: #{tpu_custom_call.1} parent=0
    _
  %s7 = ssub.s32 1, %s5
  %s8 = scalar_select 0, %s7, %s5
  $region1: #{tpu_custom_call.1} parent=0
    #allocation2 [shape = 'u8[8192]{0}', space=vmem, size = 0x2000, scoped, tag = 'input window, operand 0, single buffered']
    #allocation3 [shape = 's32[1]{0}', space=sflag, size = 0x4, scoped, tag = 'scoped memory for tpu_custom_call.1']
    #allocation4 [shape = 's32[1]{0}', space=sflag, size = 0x4, scoped, tag = 'scoped memory for tpu_custom_call.1']
    #allocation5 [shape = 'u8[65536]{0}', space=vmem, size = 0x10000, scoped, tag = 'input window, operand 1, single buffered']
    #allocation6 [shape = 's32[1]{0}', space=sflag, size = 0x4, scoped, tag = 'scoped memory for tpu_custom_call.1']
    #allocation7 [shape = 'u8[8192]{0}', space=vmem, size = 0x2000, scoped, tag = 'output window, operand 0, single buffered']
    %9 = vsyncpa [#allocation3], 0
    %10 = vsyncpa [#allocation6], 0
    %11 = vsyncpa [#allocation4], 0
    // Predicated region
    $region2: #{tpu_custom_call.1} parent=1 // pred_check
      _
    $region3: #{tpu_custom_call.1} parent=1 // pred_check_branch
      %13 = sbr.rel (0) target = $region5
    $region4: #{tpu_custom_call.1} parent=1 // pred_region
      %s15 = ssub.s32 256, 256
      %16 = vsyncadd [#allocation3], %s15
      %s17 = sshll.u32 [#allocation2], 4
      %s18 = int_to_ptr.vmem [resolvable:$true] %s17
      %23 = dma.hbm_to_vmem [thread:$0]  %s0, 256, %s18, [#allocation3], 128, 128, 8
    $region5: #{tpu_custom_call.1} parent=1 // pred_fallthru
      _
    // Predicated region
    $region6: #{tpu_custom_call.1} parent=1 // pred_check
      _
    $region7: #{tpu_custom_call.1} parent=1 // pred_check_branch
      %25 = sbr.rel (0) target = $region9
    $region8: #{tpu_custom_call.1} parent=1 // pred_region
      %s27 = ssub.s32 2048, 2048
      %28 = vsyncadd [#allocation6], %s27
      %s29 = sshll.u32 [#allocation5], 4
      %s30 = int_to_ptr.vmem [resolvable:$true] %s29
      %35 = dma.hbm_to_vmem [thread:$0]  %s1, 2048, %s30, [#allocation6], 64, 64, 4
    $region9: #{tpu_custom_call.1} parent=1 // pred_fallthru
      _
    // Predicated region
    $region10: #{tpu_custom_call.1} parent=1 // pred_check
      _
    $region11: #{tpu_custom_call.1} parent=1 // pred_check_branch
      %37 = sbr.rel (0) target = $region13
    $region12: #{tpu_custom_call.1} parent=1 // pred_region
      %38 = dma.done [#allocation3], 256
    $region13: #{tpu_custom_call.1} parent=1 // pred_fallthru
      _
    // Predicated region
    $region14: #{tpu_custom_call.1} parent=1 // pred_check
      _
    $region15: #{tpu_custom_call.1} parent=1 // pred_check_branch
      %40 = sbr.rel (0) target = $region17
    $region16: #{tpu_custom_call.1} parent=1 // pred_region
      %41 = dma.done [#allocation6], 2048
    $region17: #{tpu_custom_call.1} parent=1 // pred_fallthru
      _
    %v43 = vld [vmem:[#allocation2] sm:$0xff]
    %v44 = vld [vmem:[#allocation2 + $0x8] sm:$0xff]
    %v45 = vpack.c.bf16 %v44, %v43
    %v46 = vld [vmem:[#allocation5] sm:$0xf]
    %v47 = vld [vmem:[#allocation5 + $0x4] sm:$0xf]
    %v48 = vld [vmem:[#allocation5 + $0x8] sm:$0xf]
    %v49 = vld [vmem:[#allocation5 + $0xc] sm:$0xf]
    %v50 = vld [vmem:[#allocation5 + $0x10] sm:$0xf]
    %v51 = vld [vmem:[#allocation5 + $0x14] sm:$0xf]
    %v52 = vld [vmem:[#allocation5 + $0x18] sm:$0xf]
    %v53 = vld [vmem:[#allocation5 + $0x1c] sm:$0xf]
    %v54 = vld [vmem:[#allocation5 + $0x20] sm:$0xf]
    %v55 = vld [vmem:[#allocation5 + $0x24] sm:$0xf]
    %v56 = vld [vmem:[#allocation5 + $0x28] sm:$0xf]
    %v57 = vld [vmem:[#allocation5 + $0x2c] sm:$0xf]
    %v58 = vld [vmem:[#allocation5 + $0x30] sm:$0xf]
    %v59 = vld [vmem:[#allocation5 + $0x34] sm:$0xf]
    %v60 = vld [vmem:[#allocation5 + $0x38] sm:$0xf]
    %v61 = vld [vmem:[#allocation5 + $0x3c] sm:$0xf]
    %v62 = vld [vmem:[#allocation5 + $0x40] sm:$0xf]
    %v63 = vld [vmem:[#allocation5 + $0x44] sm:$0xf]
    %v64 = vld [vmem:[#allocation5 + $0x48] sm:$0xf]
    %v65 = vld [vmem:[#allocation5 + $0x4c] sm:$0xf]
    %v66 = vld [vmem:[#allocation5 + $0x50] sm:$0xf]
    %v67 = vld [vmem:[#allocation5 + $0x54] sm:$0xf]
    %v68 = vld [vmem:[#allocation5 + $0x58] sm:$0xf]
    %v69 = vld [vmem:[#allocation5 + $0x5c] sm:$0xf]
    %v70 = vld [vmem:[#allocation5 + $0x60] sm:$0xf]
    %v71 = vld [vmem:[#allocation5 + $0x64] sm:$0xf]
    %v72 = vld [vmem:[#allocation5 + $0x68] sm:$0xf]
    %v73 = vld [vmem:[#allocation5 + $0x6c] sm:$0xf]
    %v74 = vld [vmem:[#allocation5 + $0x70] sm:$0xf]
    %v75 = vld [vmem:[#allocation5 + $0x74] sm:$0xf]
    %v76 = vld [vmem:[#allocation5 + $0x78] sm:$0xf]
    %v77 = vld [vmem:[#allocation5 + $0x7c] sm:$0xf]
    %v110 = vunpack.c.l.b16 %v46
    %v111 = vunpack.c.l.b16 %v47
    %v112 = vunpack.c.l.b16 %v48
    %v113 = vunpack.c.l.b16 %v49
    %v114 = vunpack.c.l.b16 %v50
    %v115 = vunpack.c.l.b16 %v51
    %v116 = vunpack.c.l.b16 %v52
    %v117 = vunpack.c.l.b16 %v53
    %v118 = vunpack.c.l.b16 %v54
    %v119 = vunpack.c.l.b16 %v55
    %v120 = vunpack.c.l.b16 %v56
    %v121 = vunpack.c.l.b16 %v57
    %v122 = vunpack.c.l.b16 %v58
    %v123 = vunpack.c.l.b16 %v59
    %v124 = vunpack.c.l.b16 %v60
    %v125 = vunpack.c.l.b16 %v61
    %v126 = vunpack.c.l.b16 %v62
    %v127 = vunpack.c.l.b16 %v63
    %v128 = vunpack.c.l.b16 %v64
    %v129 = vunpack.c.l.b16 %v65
    %v130 = vunpack.c.l.b16 %v66
    %v131 = vunpack.c.l.b16 %v67
    %v132 = vunpack.c.l.b16 %v68
    %v133 = vunpack.c.l.b16 %v69
    %v134 = vunpack.c.l.b16 %v70
    %v135 = vunpack.c.l.b16 %v71
    %v136 = vunpack.c.l.b16 %v72
    %v137 = vunpack.c.l.b16 %v73
    %v138 = vunpack.c.l.b16 %v74
    %v139 = vunpack.c.l.b16 %v75
    %v140 = vunpack.c.l.b16 %v76
    %v141 = vunpack.c.l.b16 %v77
    %v142 = vpack.c.b16 %v111, %v110
    %v143 = vpack.c.b16 %v113, %v112
    %v144 = vpack.c.b16 %v115, %v114
    %v145 = vpack.c.b16 %v117, %v116
    %v146 = vpack.c.b16 %v119, %v118
    %v147 = vpack.c.b16 %v121, %v120
    %v148 = vpack.c.b16 %v123, %v122
    %v149 = vpack.c.b16 %v125, %v124
    %v150 = vpack.c.b16 %v127, %v126
    %v151 = vpack.c.b16 %v129, %v128
    %v152 = vpack.c.b16 %v131, %v130
    %v153 = vpack.c.b16 %v133, %v132
    %v154 = vpack.c.b16 %v135, %v134
    %v155 = vpack.c.b16 %v137, %v136
    %v156 = vpack.c.b16 %v139, %v138
    %v157 = vpack.c.b16 %v141, %v140
    %174 = vmatprep.subr.bf16.mxu0 0
    %175 = vmatpush1.bf16.xpose.msra.mxu0 %v149
    %176 = vmatprep.subr.bf16.mxu0 0
    %177 = vmatpush1.bf16.xpose.msra.mxu0 %v148
    %178 = vmatprep.subr.bf16.mxu0 0
    %179 = vmatpush1.bf16.xpose.msra.mxu0 %v147
    %180 = vmatprep.subr.bf16.mxu0 0
    %181 = vmatpush1.bf16.xpose.msra.mxu0 %v146
    %182 = vmatprep.subr.bf16.mxu0 0
    %183 = vmatpush1.bf16.xpose.msra.mxu0 %v145
    %184 = vmatprep.subr.bf16.mxu0 0
    %185 = vmatpush1.bf16.xpose.msra.mxu0 %v144
    %186 = vmatprep.subr.bf16.mxu0 0
    %187 = vmatpush1.bf16.xpose.msra.mxu0 %v143
    %188 = vmatprep.subr.bf16.mxu0 0
    %189 = vmatpush1.bf16.xpose.msra.mxu0 %v142
    %190 = vmatprep.subr.bf16.mxu0 0
    %191 = vmatpush2.bf16.xpose.msra.mxu0 %v157
    %192 = vmatprep.subr.bf16.mxu0 0
    %193 = vmatpush2.bf16.xpose.msra.mxu0 %v156
    %194 = vmatprep.subr.bf16.mxu0 0
    %195 = vmatpush2.bf16.xpose.msra.mxu0 %v155
    %196 = vmatprep.subr.bf16.mxu0 0
    %197 = vmatpush2.bf16.xpose.msra.mxu0 %v154
    %198 = vmatprep.subr.bf16.mxu0 0
    %199 = vmatpush2.bf16.xpose.msra.mxu0 %v153
    %200 = vmatprep.subr.bf16.mxu0 0
    %201 = vmatpush2.bf16.xpose.msra.mxu0 %v152
    %202 = vmatprep.subr.bf16.mxu0 0
    %203 = vmatpush2.bf16.xpose.msra.mxu0 %v151
    %204 = vmatprep.subr.bf16.mxu0 0
    %205 = vmatpush2.bf16.xpose.msra.mxu0 %v150
    %206 = vmatprep.mubr.bf16.mxu0 0
    %207 = vmatmul.mubr.bf16.gmra.mxu0 %v45
    %v208 = vpop.f32.mrf.mxu0
    %v209 = vadd.f32 0.0, %v208
    %v210 = vpop.f32.mrf.mxu0
    %v211 = vadd.f32 0.0, %v210
    %v212 = vpop.f32.mrf.mxu0
    %v213 = vadd.f32 0.0, %v212
    %v214 = vpop.f32.mrf.mxu0
    %v215 = vadd.f32 0.0, %v214
    %216 = vdwg.mxu0
    %v217 = vpack.c.bf16 %v213, %v209
    %v218 = vpack.c.bf16 %v215, %v211
    %v221 = vunpack.c.l.b16 %v217
    %v222 = vunpack.c.l.b16 %v218
    %v223 = vunpack.c.h.b16 %v217
    %v224 = vunpack.c.h.b16 %v218
    %v225 = vpack.c.b16 %v222, %v221
    %v226 = vpack.c.b16 %v224, %v223
    %229 = vst [vmem:[#allocation7] sm:$0xff] %v225
    %230 = vst [vmem:[#allocation7 + $0x8] sm:$0xff] %v226
    %v231 = vmax.f32 %v209, %v211
    %232 = vmax.xlane.f32.xlu0 %v231
    %v233 = vpop.xlane.xlu0 %232
    %v234 = vmax.f32 %v213, %v215
    %235 = vmax.xlane.f32.xlu0 %v234
    %v236 = vpop.xlane.xlu0 %235
    %v237 = vsub.f32 %v209, %v233
    %v238 = vsub.f32 %v211, %v233
    %v239 = vsub.f32 %v213, %v236
    %v240 = vsub.f32 %v215, %v236
    %v241 = vmul.f32 %v237, 1.442695
    %v242 = vpow.pop %v241
    %v243 = vmul.f32 %v238, 1.442695
    %v244 = vpow.pop %v243
    %v245 = vmul.f32 %v239, 1.442695
    %v246 = vpow.pop %v245
    %v247 = vmul.f32 %v240, 1.442695
    %v248 = vpow.pop %v247
    %v249 = vadd.f32 %v242, %v244
    %250 = vadd.xlane.f32.xlu0 %v249
    %v251 = vpop.xlane.xlu0 %250
    %v252 = vadd.f32 %v246, %v248
    %253 = vadd.xlane.f32.xlu0 %v252
    %v254 = vpop.xlane.xlu0 %253
    %v255 = vlog2.pop %v251
    %v256 = vmul.f32 %v255, 0.6931472
    %v257 = vlog2.pop %v254
    %v258 = vmul.f32 %v257, 0.6931472
    %v259 = vadd.f32 %v233, %v256
    %v260 = vadd.f32 %v236, %v258
    %vm261 = vcmask 7168
    %262 = vst.msk [vmem:[%s3] sm:$0xff] %vm261, %v259
    %263 = vst.msk [vmem:[%s3 + $0x8] sm:$0xff] %vm261, %v260
    // Predicated region
    $region18: #{tpu_custom_call.1} parent=1 // pred_check
      _
    $region19: #{tpu_custom_call.1} parent=1 // pred_check_branch
      %265 = sbr.rel (0) target = $region21
    $region20: #{tpu_custom_call.1} parent=1 // pred_region
      %s267 = ssub.s32 256, 256
      %268 = vsyncadd [#allocation4], %s267
      %s269 = sshll.u32 [#allocation7], 4
      %s270 = int_to_ptr.vmem [resolvable:$true] %s269
      %275 = dma.vmem_to_hbm [thread:$0]  %s270, 256, %s2, [#allocation4], 128, 128, 8
    $region21: #{tpu_custom_call.1} parent=1 // pred_fallthru
      _
    // Predicated region
    $region22: #{tpu_custom_call.1} parent=1 // pred_check
      _
    $region23: #{tpu_custom_call.1} parent=1 // pred_check_branch
      %277 = sbr.rel (0) target = $region25
    $region24: #{tpu_custom_call.1} parent=1 // pred_region
      _
    $region25: #{tpu_custom_call.1} parent=1 // pred_fallthru
      _
    // Predicated region
    $region26: #{tpu_custom_call.1} parent=1 // pred_check
      _
    $region27: #{tpu_custom_call.1} parent=1 // pred_check_branch
      %279 = sbr.rel (0) target = $region29
    $region28: #{tpu_custom_call.1} parent=1 // pred_region
      %280 = dma.done [#allocation4], 256
    $region29: #{tpu_custom_call.1} parent=1 // pred_fallthru
      _
    // Predicated region
    $region30: #{tpu_custom_call.1} parent=1 // pred_check
      _
    $region31: #{tpu_custom_call.1} parent=1 // pred_check_branch
      %282 = sbr.rel (0) target = $region33
    $region32: #{tpu_custom_call.1} parent=1 // pred_region
      _
    $region33: #{tpu_custom_call.1} parent=1 // pred_fallthru
      _
    %283 = vsyncpa [#allocation3], 1
    %284 = vsyncpa [#allocation6], 1
    %285 = vsyncpa [#allocation4], 1

</llo_original>
